<compile_context>
chip_gen: v5e
topology: v5e:2x2
jax: 0.10.0
libtpu: 0.0.40
codegen_flags: <defaults>
</compile_context>

<pallas_src>
import functools

import numpy as np
import jax
import jax.numpy as jnp
from jax.experimental import pallas as pl
from jax.experimental.pallas import tpu as pltpu


# --------------------------------------------------------------------------
# Fused ConvBlock kernel: one grid step == `Bblk` batch elements, full time axis.
# Refs (per step):
#   x_ref   : (Bblk, C, T)        activation (also the residual source)
#   pd_ref  : (Bblk, P+1, K)      pose_dome with a ones row (bias folding), compute dtype
#   sel_ref : (K, T)              0/1 group-select matrix, compute dtype, resident
#   cw_ref  : (2C, ks*C)          fused dilated-conv weight, compute dtype, resident
#   qw_ref  : (2C, P+1)           cond 1x1 weight with conv bias column, compute dtype, resident
#   ow_ref  : (2C, C)             out 1x1 weight, compute dtype, resident
#   ob_ref  : (2C, 1)             out 1x1 bias, f32, resident
# Outputs:
#   res_ref, skip_ref : (Bblk, C, T)
# --------------------------------------------------------------------------
def _convblock_kernel(x_ref, pd_ref, sel_ref, cw_ref, qw_ref, ow_ref, ob_ref,
                      res_ref, skip_ref, *, channels, kernel_size, dilation, pad,
                      compute_dtype):
    C = channels
    Bblk, _, T = x_ref.shape
    cdt = compute_dtype
    f32 = jnp.float32

    # Per-tap lane offsets (tap i reads x[:, t + i*d - pad]) and hoisted edge masks.
    offs = [i * dilation - pad for i in range(kernel_size)]
    lane_t = jax.lax.broadcasted_iota(jnp.int32, (C, T), 1)
    masks = {off: (lane_t + off >= 0) & (lane_t + off < T)
             for off in offs if off != 0}

    cw = cw_ref[...]          # (2C, ks*C)
    qw = qw_ref[...]          # (2C, P+1)
    ow = ow_ref[...]          # (2C, C)
    ob = ob_ref[...]          # (2C, 1) f32
    sel = sel_ref[...]        # (K, T)

    for b in range(Bblk):     # static unrolled loop over the batch block
        x = x_ref[b]                                   # (C, T), input dtype
        xc = x.astype(cdt)

        # Build the stacked shifted-window operand (ks*C, T): row block i holds
        # x shifted by off_i with zeros outside [0, T).  Rolls run on the XLU;
        # no HBM padding copy, no lane-unaligned slice relayouts.
        parts = []
        for off in offs:
            if off == 0:
                parts.append(xc)
            else:
                shifted = pltpu.roll(xc, shift=(-off) % T, axis=1)
                parts.append(jnp.where(masks[off], shifted, jnp.zeros_like(shifted)))
        xs = jnp.concatenate(parts, axis=0)            # (ks*C, T)

        # Dilated conv as ONE fused MXU matmul.
        acc = jnp.dot(cw, xs, preferred_element_type=f32)            # (2C, T)

        # Conditioning 1x1 conv (+ conv bias folded in via the ones row of pd),
        # broadcast over each time group with the 0/1 select matmul (no reshapes).
        pose = jnp.dot(qw, pd_ref[b], preferred_element_type=f32)    # (2C, K)
        acc = acc + jnp.dot(pose.astype(cdt), sel, preferred_element_type=f32)

        # Gated activation: tanh / exp / approx-reciprocal all use the EUP slot.
        gate = jnp.tanh(acc[:C, :]) * pl.reciprocal(1.0 + jnp.exp(-acc[C:, :]),
                                                    approx=True)     # (C, T) f32

        # Out 1x1 conv + residual / skip split (lane-dense T=128 stores).
        o = jnp.dot(ow, gate.astype(cdt), preferred_element_type=f32) + ob   # (2C, T)
        res_ref[b] = ((o[:C, :] + x.astype(f32)) * 0.5).astype(res_ref.dtype)
        skip_ref[b] = o[C:, :].astype(skip_ref.dtype)


# --------------------------------------------------------------------------
# Wrapper: weight fusion / pre-cast + pallas_call. No activation copies in HBM.
# --------------------------------------------------------------------------
def convblock_forward(x, pose_dome, params, channels, kernel_size, dilation,
                      causal=False, compute_dtype=jnp.float32, out_dtype=None,
                      batch_block=2):
    B, C, T = x.shape
    assert C == channels
    _, P, K = pose_dome.shape
    assert T % K == 0
    C2 = 2 * channels
    out_dtype = x.dtype if out_dtype is None else out_dtype

    pad_total = dilation * (kernel_size - 1)
    pad = pad_total if causal else pad_total // 2      # nn.Conv1d pads both sides with `pad`
    T_out = T + 2 * pad - pad_total
    # TODO(synk): causal=True with kernel_size>1 makes the reference module's `res + x`
    # shape-mismatch (conv output length is T+pad, not T); the demo uses causal=False.
    assert T_out == T, "ConvBlock needs conv output length == T for the residual add"

    bblk = batch_block if (B % batch_block == 0) else 1
    cdt = compute_dtype

    # Grid-resident weights: fuse taps, fold the conv bias, pre-cast ONCE here.
    cw_fused = jnp.transpose(params["conv_w"], (1, 0, 2)).reshape(
        C2, kernel_size * C).astype(cdt)                              # (2C, ks*C)
    qw_aug = jnp.concatenate(
        [params["cond_w"], params["conv_b"].reshape(C2, 1)], axis=1).astype(cdt)  # (2C, P+1)
    ow = params["out_w"].astype(cdt)                                  # (2C, C)
    ob = params["out_b"].reshape(C2, 1).astype(jnp.float32)           # (2C, 1)
    # pose_dome augmented with a ones row so qw_aug @ pose_aug also adds conv_b.
    pose_aug = jnp.concatenate(
        [pose_dome, jnp.ones((B, 1, K), pose_dome.dtype)], axis=1).astype(cdt)    # (B, P+1, K)
    # Hoisted group-select matrix: sel[k, t] = 1 iff time t belongs to group k.
    Tg = T // K
    sel = (jnp.arange(T)[None, :] // Tg == jnp.arange(K)[:, None]).astype(cdt)    # (K, T)

    kern = functools.partial(
        _convblock_kernel, channels=channels, kernel_size=kernel_size,
        dilation=dilation, pad=pad, compute_dtype=cdt)

    res, skip = pl.pallas_call(
        kern,
        grid=(B // bblk,),
        in_specs=[
            pl.BlockSpec((bblk, C, T), lambda b: (b, 0, 0)),                # x (also residual)
            pl.BlockSpec((bblk, P + 1, K), lambda b: (b, 0, 0)),            # pose_dome (+ones)
            pl.BlockSpec((K, T), lambda b: (0, 0)),                         # group select (resident)
            pl.BlockSpec((C2, kernel_size * C), lambda b: (0, 0)),          # fused conv weight
            pl.BlockSpec((C2, P + 1), lambda b: (0, 0)),                    # cond weight + bias col
            pl.BlockSpec((C2, C), lambda b: (0, 0)),                        # out weight
            pl.BlockSpec((C2, 1), lambda b: (0, 0)),                        # out bias
        ],
        out_specs=(
            pl.BlockSpec((bblk, C, T), lambda b: (b, 0, 0)),                # res (lane-dense T)
            pl.BlockSpec((bblk, C, T), lambda b: (b, 0, 0)),                # skip
        ),
        out_shape=(
            jax.ShapeDtypeStruct((B, C, T), out_dtype),
            jax.ShapeDtypeStruct((B, C, T), out_dtype),
        ),
        compiler_params=pltpu.CompilerParams(
            dimension_semantics=("parallel",),          # v7x: split batch blocks over 2 TCs
            vmem_limit_bytes=32 * 1024 * 1024,          # > v5e's 16 MiB default, safe on v7x
        ),
    )(x, pose_aug, sel, cw_fused, qw_aug, ow, ob)
    return res, skip


# --------------------------------------------------------------------------
# Pure-JAX reference (mirrors the PyTorch forward) for correctness checking
# --------------------------------------------------------------------------
def convblock_reference(x, pose_dome, params, channels, kernel_size, dilation, causal=False):
    B, C, T = x.shape
    K = pose_dome.shape[-1]
    C2 = 2 * channels
    pad_total = dilation * (kernel_size - 1)
    pad = pad_total if causal else pad_total // 2
    xp = jnp.pad(x, ((0, 0), (0, 0), (pad, pad)))
    T_out = T + 2 * pad - pad_total
    hp = jax.lax.Precision.HIGHEST

    y = jnp.zeros((B, C2, T_out), jnp.float32)
    for i in range(kernel_size):
        y = y + jnp.einsum("oc,bct->bot", params["conv_w"][i],
                           xp[:, :, i * dilation:i * dilation + T_out], precision=hp)
    y = y + params["conv_b"][None, :, None]

    pz = jnp.einsum("op,bpk->bok", params["cond_w"], pose_dome, precision=hp)   # (B, 2C, K)
    y = (y.reshape(B, C2, K, T_out // K) + pz[..., None]).reshape(B, C2, T_out)

    y1, y2 = y[:, :channels], y[:, channels:]
    g = jnp.tanh(y1) * jax.nn.sigmoid(y2)

    o = jnp.einsum("oc,bct->bot", params["out_w"], g, precision=hp) + params["out_b"][None, :, None]
    res, skip = o[:, :channels], o[:, channels:]
    return (res + x) * 0.5, skip


# --------------------------------------------------------------------------
if __name__ == "__main__":
    # Small shapes consistent with the module. T=128 keeps the time axis lane-dense;
    # channels / 2*channels multiples of 8 so sublane tiles are unpadded.
    B, channels, pose_dim = 4, 16, 8
    kernel_size, dilation, causal = 3, 1, False      # causal=False: conv output length == T
    T, K = 128, 8                                    # T % K == 0
    C2 = 2 * channels

    key = jax.random.PRNGKey(0)
    keys = jax.random.split(key, 7)
    params = {
        # Conv1d(channels, 2*channels, ks) weight stored tap-major: (ks, 2C, C)
        "conv_w": 0.1 * jax.random.normal(keys[0], (kernel_size, C2, channels), jnp.float32),
        "conv_b": 0.1 * jax.random.normal(keys[1], (C2,), jnp.float32),
        # Conv1d(pose_dim, 2*channels, 1, bias=False) weight: (2C, P)
        "cond_w": 0.2 * jax.random.normal(keys[2], (C2, pose_dim), jnp.float32),
        # Conv1d(channels, 2*channels, 1) weight/bias: (2C, C), (2C,)
        "out_w": 0.2 * jax.random.normal(keys[3], (C2, channels), jnp.float32),
        "out_b": 0.1 * jax.random.normal(keys[4], (C2,), jnp.float32),
    }
    x = jax.random.normal(keys[5], (B, channels, T), jnp.float32)
    pose_dome = jax.random.normal(keys[6], (B, pose_dim, K), jnp.float32)

    res_ref, skip_ref = convblock_reference(x, pose_dome, params, channels, kernel_size,
                                            dilation, causal=causal)
    res_ref, skip_ref = jax.block_until_ready((res_ref, skip_ref))

    # --- f32 operand path ---
    res, skip = convblock_forward(x, pose_dome, params, channels, kernel_size, dilation,
                                  causal=causal, compute_dtype=jnp.float32, batch_block=2)
    res, skip = jax.block_until_ready((res, skip))

    assert res.shape == (B, channels, T) and skip.shape == (B, channels, T)
    # Tolerance allows for TPU matmul / approx-reciprocal / transcendental differences.
    if not np.allclose(np.asarray(res), np.asarray(res_ref), rtol=2e-2, atol=2e-2):
        raise AssertionError("res mismatch (f32 path)")
    if not np.allclose(np.asarray(skip), np.asarray(skip_ref), rtol=2e-2, atol=2e-2):
        raise AssertionError("skip mismatch (f32 path)")

    # --- bf16 MXU-operand path (native rate on v6e/v7x), f32 accumulation ---
    res_bf, skip_bf = convblock_forward(x, pose_dome, params, channels, kernel_size, dilation,
                                        causal=causal, compute_dtype=jnp.bfloat16, batch_block=2)
    res_bf, skip_bf = jax.block_until_ready((res_bf, skip_bf))
    if not np.allclose(np.asarray(res_bf), np.asarray(res_ref), rtol=5e-2, atol=5e-2):
        raise AssertionError("res mismatch (bf16 path)")
    if not np.allclose(np.asarray(skip_bf), np.asarray(skip_ref), rtol=5e-2, atol=5e-2):
        raise AssertionError("skip mismatch (bf16 path)")

    print("KERNEL_OK")
</pallas_src>

<mosaic_0001>
module attributes {stable_mosaic.version = 11 : i64} {
  func.func @_convblock_kernel(%arg0: i32, %arg1: memref<2x16x128xf32, #tpu.memory_space<vmem>>, %arg2: memref<2x9x8xf32, #tpu.memory_space<vmem>>, %arg3: memref<8x128xf32, #tpu.memory_space<vmem>>, %arg4: memref<32x48xf32, #tpu.memory_space<vmem>>, %arg5: memref<32x9xf32, #tpu.memory_space<vmem>>, %arg6: memref<32x16xf32, #tpu.memory_space<vmem>>, %arg7: memref<32x1xf32, #tpu.memory_space<vmem>>, %arg8: memref<2x16x128xf32, #tpu.memory_space<vmem>>, %arg9: memref<2x16x128xf32, #tpu.memory_space<vmem>>) attributes {dimension_semantics = [#tpu.dimension_semantics<parallel>], iteration_bounds = array<i64: 2>, scalar_prefetch = 0 : i64, scratch_operands = 0 : i64, tpu.core_type = #tpu.core_type<tc>, window_params = [{transform_indices = @transform_0, window_bounds = array<i64: 2, 16, 128>}, {transform_indices = @transform_1, window_bounds = array<i64: 2, 9, 8>}, {pipeline_mode = #tpu.pipeline_mode<synchronous>, transform_indices = @transform_2, window_bounds = array<i64: 8, 128>}, {pipeline_mode = #tpu.pipeline_mode<synchronous>, transform_indices = @transform_3, window_bounds = array<i64: 32, 48>}, {pipeline_mode = #tpu.pipeline_mode<synchronous>, transform_indices = @transform_4, window_bounds = array<i64: 32, 9>}, {pipeline_mode = #tpu.pipeline_mode<synchronous>, transform_indices = @transform_5, window_bounds = array<i64: 32, 16>}, {pipeline_mode = #tpu.pipeline_mode<synchronous>, transform_indices = @transform_6, window_bounds = array<i64: 32, 1>}, {transform_indices = @transform_7, window_bounds = array<i64: 2, 16, 128>}, {transform_indices = @transform_8, window_bounds = array<i64: 2, 16, 128>}]} {
    %0 = tpu.iota {dimensions = array<i32: 1>} : vector<16x128xi32>
    %c-1_i32 = arith.constant -1 : i32
    %1 = vector.broadcast %c-1_i32 : i32 to vector<16x128xi32>
    %2 = arith.addi %0, %1 : vector<16x128xi32>
    %c0_i32 = arith.constant 0 : i32
    %3 = vector.broadcast %c0_i32 : i32 to vector<16x128xi32>
    %4 = arith.cmpi sge, %2, %3 : vector<16x128xi32>
    %c-1_i32_0 = arith.constant -1 : i32
    %5 = vector.broadcast %c-1_i32_0 : i32 to vector<16x128xi32>
    %6 = arith.addi %0, %5 : vector<16x128xi32>
    %c128_i32 = arith.constant 128 : i32
    %7 = vector.broadcast %c128_i32 : i32 to vector<16x128xi32>
    %8 = arith.cmpi slt, %6, %7 : vector<16x128xi32>
    %9 = arith.andi %4, %8 : vector<16x128xi1>
    %c1_i32 = arith.constant 1 : i32
    %10 = vector.broadcast %c1_i32 : i32 to vector<16x128xi32>
    %11 = arith.addi %0, %10 : vector<16x128xi32>
    %c0_i32_1 = arith.constant 0 : i32
    %12 = vector.broadcast %c0_i32_1 : i32 to vector<16x128xi32>
    %13 = arith.cmpi sge, %11, %12 : vector<16x128xi32>
    %c1_i32_2 = arith.constant 1 : i32
    %14 = vector.broadcast %c1_i32_2 : i32 to vector<16x128xi32>
    %15 = arith.addi %0, %14 : vector<16x128xi32>
    %c128_i32_3 = arith.constant 128 : i32
    %16 = vector.broadcast %c128_i32_3 : i32 to vector<16x128xi32>
    %17 = arith.cmpi slt, %15, %16 : vector<16x128xi32>
    %18 = arith.andi %13, %17 : vector<16x128xi1>
    %c0 = arith.constant 0 : index
    %c0_4 = arith.constant 0 : index
    %19 = vector.load %arg4[%c0, %c0_4] : memref<32x48xf32, #tpu.memory_space<vmem>>, vector<32x48xf32>
    %c0_5 = arith.constant 0 : index
    %c0_6 = arith.constant 0 : index
    %20 = vector.load %arg5[%c0_5, %c0_6] : memref<32x9xf32, #tpu.memory_space<vmem>>, vector<32x9xf32>
    %c0_7 = arith.constant 0 : index
    %c0_8 = arith.constant 0 : index
    %21 = vector.load %arg6[%c0_7, %c0_8] : memref<32x16xf32, #tpu.memory_space<vmem>>, vector<32x16xf32>
    %c0_9 = arith.constant 0 : index
    %c0_10 = arith.constant 0 : index
    %22 = vector.load %arg7[%c0_9, %c0_10] : memref<32x1xf32, #tpu.memory_space<vmem>>, vector<32x1xf32>
    %c0_11 = arith.constant 0 : index
    %c0_12 = arith.constant 0 : index
    %23 = vector.load %arg3[%c0_11, %c0_12] : memref<8x128xf32, #tpu.memory_space<vmem>>, vector<8x128xf32>
    %c0_13 = arith.constant 0 : index
    %c0_14 = arith.constant 0 : index
    %c0_15 = arith.constant 0 : index
    %24 = vector.load %arg1[%c0_13, %c0_14, %c0_15] : memref<2x16x128xf32, #tpu.memory_space<vmem>>, vector<1x16x128xf32>
    %25 = vector.shape_cast %24 : vector<1x16x128xf32> to vector<16x128xf32>
    %c1_i32_16 = arith.constant 1 : i32
    %26 = tpu.dynamic_rotate %25 by %c1_i32_16 dim 1 : vector<16x128xf32>, i32 -> vector<16x128xf32>
    %cst = arith.constant 0.000000e+00 : f32
    %27 = vector.broadcast %cst : f32 to vector<16x128xf32>
    %28 = arith.select %9, %26, %27 : vector<16x128xi1>, vector<16x128xf32>
    %c127_i32 = arith.constant 127 : i32
    %29 = tpu.dynamic_rotate %25 by %c127_i32 dim 1 : vector<16x128xf32>, i32 -> vector<16x128xf32>
    %cst_17 = arith.constant 0.000000e+00 : f32
    %30 = vector.broadcast %cst_17 : f32 to vector<16x128xf32>
    %31 = arith.select %18, %29, %30 : vector<16x128xi1>, vector<16x128xf32>
    %32 = tpu.concatenate %28, %25, %31 in 0 : vector<16x128xf32>, vector<16x128xf32>, vector<16x128xf32> -> vector<48x128xf32>
    %cst_18 = arith.constant dense<0.000000e+00> : vector<32x128xf32>
    %33 = tpu.matmul %19, %32, %cst_18 {dimension_numbers = #tpu.dot_dimension_numbers<[1], [0], [0], [1], [0, 0, 1, 1], [], []>} : vector<32x48xf32>, vector<48x128xf32>, vector<32x128xf32> -> vector<32x128xf32>
    %c0_19 = arith.constant 0 : index
    %c0_20 = arith.constant 0 : index
    %c0_21 = arith.constant 0 : index
    %34 = vector.load %arg2[%c0_19, %c0_20, %c0_21] : memref<2x9x8xf32, #tpu.memory_space<vmem>>, vector<1x9x8xf32>
    %35 = vector.shape_cast %34 : vector<1x9x8xf32> to vector<9x8xf32>
    %cst_22 = arith.constant dense<0.000000e+00> : vector<32x8xf32>
    %36 = tpu.matmul %20, %35, %cst_22 {dimension_numbers = #tpu.dot_dimension_numbers<[1], [0], [0], [1], [0, 0, 1, 1], [], []>} : vector<32x9xf32>, vector<9x8xf32>, vector<32x8xf32> -> vector<32x8xf32>
    %cst_23 = arith.constant dense<0.000000e+00> : vector<32x128xf32>
    %37 = tpu.matmul %36, %23, %cst_23 {dimension_numbers = #tpu.dot_dimension_numbers<[1], [0], [0], [1], [0, 0, 1, 1], [], []>} : vector<32x8xf32>, vector<8x128xf32>, vector<32x128xf32> -> vector<32x128xf32>
    %38 = arith.addf %33, %37 : vector<32x128xf32>
    %39 = vector.extract_strided_slice %38 {offsets = [0, 0], sizes = [16, 128], strides = [1, 1]} : vector<32x128xf32> to vector<16x128xf32>
    %40 = math.tanh %39 : vector<16x128xf32>
    %41 = vector.extract_strided_slice %38 {offsets = [16, 0], sizes = [16, 128], strides = [1, 1]} : vector<32x128xf32> to vector<16x128xf32>
    %cst_24 = arith.constant 0.000000e+00 : f32
    %42 = vector.broadcast %cst_24 : f32 to vector<16x128xf32>
    %43 = arith.subf %42, %41 : vector<16x128xf32>
    %44 = math.exp %43 : vector<16x128xf32>
    %cst_25 = arith.constant 1.000000e+00 : f32
    %45 = vector.broadcast %cst_25 : f32 to vector<16x128xf32>
    %46 = arith.addf %45, %44 : vector<16x128xf32>
    %47 = tpu.reciprocal %46 {approx = true} : vector<16x128xf32> -> vector<16x128xf32>
    %48 = arith.mulf %40, %47 : vector<16x128xf32>
    %cst_26 = arith.constant dense<0.000000e+00> : vector<32x128xf32>
    %49 = tpu.matmul %21, %48, %cst_26 {dimension_numbers = #tpu.dot_dimension_numbers<[1], [0], [0], [1], [0, 0, 1, 1], [], []>} : vector<32x16xf32>, vector<16x128xf32>, vector<32x128xf32> -> vector<32x128xf32>
    %50 = vector.broadcast %22 : vector<32x1xf32> to vector<32x128xf32>
    %51 = arith.addf %49, %50 : vector<32x128xf32>
    %52 = vector.extract_strided_slice %51 {offsets = [0, 0], sizes = [16, 128], strides = [1, 1]} : vector<32x128xf32> to vector<16x128xf32>
    %53 = arith.addf %52, %25 : vector<16x128xf32>
    %cst_27 = arith.constant 5.000000e-01 : f32
    %54 = vector.broadcast %cst_27 : f32 to vector<16x128xf32>
    %55 = arith.mulf %53, %54 : vector<16x128xf32>
    %c0_28 = arith.constant 0 : index
    %c0_29 = arith.constant 0 : index
    %c0_30 = arith.constant 0 : index
    %56 = vector.load %arg8[%c0_28, %c0_29, %c0_30] : memref<2x16x128xf32, #tpu.memory_space<vmem>>, vector<1x16x128xf32>
    %57 = vector.shape_cast %56 : vector<1x16x128xf32> to vector<16x128xf32>
    %58 = vector.shape_cast %55 : vector<16x128xf32> to vector<1x16x128xf32>
    tpu.vector_store %arg8[%c0_28, %c0_29, %c0_30], %58 {strides = array<i32>} : memref<2x16x128xf32, #tpu.memory_space<vmem>>, vector<1x16x128xf32>,
    %59 = vector.extract_strided_slice %51 {offsets = [16, 0], sizes = [16, 128], strides = [1, 1]} : vector<32x128xf32> to vector<16x128xf32>
    %c0_31 = arith.constant 0 : index
    %c0_32 = arith.constant 0 : index
    %c0_33 = arith.constant 0 : index
    %60 = vector.load %arg9[%c0_31, %c0_32, %c0_33] : memref<2x16x128xf32, #tpu.memory_space<vmem>>, vector<1x16x128xf32>
    %61 = vector.shape_cast %60 : vector<1x16x128xf32> to vector<16x128xf32>
    %62 = vector.shape_cast %59 : vector<16x128xf32> to vector<1x16x128xf32>
    tpu.vector_store %arg9[%c0_31, %c0_32, %c0_33], %62 {strides = array<i32>} : memref<2x16x128xf32, #tpu.memory_space<vmem>>, vector<1x16x128xf32>,
    %c1 = arith.constant 1 : index
    %c0_34 = arith.constant 0 : index
    %c0_35 = arith.constant 0 : index
    %63 = vector.load %arg1[%c1, %c0_34, %c0_35] : memref<2x16x128xf32, #tpu.memory_space<vmem>>, vector<1x16x128xf32>
    %64 = vector.shape_cast %63 : vector<1x16x128xf32> to vector<16x128xf32>
    %c1_i32_36 = arith.constant 1 : i32
    %65 = tpu.dynamic_rotate %64 by %c1_i32_36 dim 1 : vector<16x128xf32>, i32 -> vector<16x128xf32>
    %cst_37 = arith.constant 0.000000e+00 : f32
    %66 = vector.broadcast %cst_37 : f32 to vector<16x128xf32>
    %67 = arith.select %9, %65, %66 : vector<16x128xi1>, vector<16x128xf32>
    %c127_i32_38 = arith.constant 127 : i32
    %68 = tpu.dynamic_rotate %64 by %c127_i32_38 dim 1 : vector<16x128xf32>, i32 -> vector<16x128xf32>
    %cst_39 = arith.constant 0.000000e+00 : f32
    %69 = vector.broadcast %cst_39 : f32 to vector<16x128xf32>
    %70 = arith.select %18, %68, %69 : vector<16x128xi1>, vector<16x128xf32>
    %71 = tpu.concatenate %67, %64, %70 in 0 : vector<16x128xf32>, vector<16x128xf32>, vector<16x128xf32> -> vector<48x128xf32>
    %cst_40 = arith.constant dense<0.000000e+00> : vector<32x128xf32>
    %72 = tpu.matmul %19, %71, %cst_40 {dimension_numbers = #tpu.dot_dimension_numbers<[1], [0], [0], [1], [0, 0, 1, 1], [], []>} : vector<32x48xf32>, vector<48x128xf32>, vector<32x128xf32> -> vector<32x128xf32>
    %c1_41 = arith.constant 1 : index
    %c0_42 = arith.constant 0 : index
    %c0_43 = arith.constant 0 : index
    %73 = vector.load %arg2[%c1_41, %c0_42, %c0_43] : memref<2x9x8xf32, #tpu.memory_space<vmem>>, vector<1x9x8xf32>
    %74 = vector.shape_cast %73 : vector<1x9x8xf32> to vector<9x8xf32>
    %cst_44 = arith.constant dense<0.000000e+00> : vector<32x8xf32>
    %75 = tpu.matmul %20, %74, %cst_44 {dimension_numbers = #tpu.dot_dimension_numbers<[1], [0], [0], [1], [0, 0, 1, 1], [], []>} : vector<32x9xf32>, vector<9x8xf32>, vector<32x8xf32> -> vector<32x8xf32>
    %cst_45 = arith.constant dense<0.000000e+00> : vector<32x128xf32>
    %76 = tpu.matmul %75, %23, %cst_45 {dimension_numbers = #tpu.dot_dimension_numbers<[1], [0], [0], [1], [0, 0, 1, 1], [], []>} : vector<32x8xf32>, vector<8x128xf32>, vector<32x128xf32> -> vector<32x128xf32>
    %77 = arith.addf %72, %76 : vector<32x128xf32>
    %78 = vector.extract_strided_slice %77 {offsets = [0, 0], sizes = [16, 128], strides = [1, 1]} : vector<32x128xf32> to vector<16x128xf32>
    %79 = math.tanh %78 : vector<16x128xf32>
    %80 = vector.extract_strided_slice %77 {offsets = [16, 0], sizes = [16, 128], strides = [1, 1]} : vector<32x128xf32> to vector<16x128xf32>
    %cst_46 = arith.constant 0.000000e+00 : f32
    %81 = vector.broadcast %cst_46 : f32 to vector<16x128xf32>
    %82 = arith.subf %81, %80 : vector<16x128xf32>
    %83 = math.exp %82 : vector<16x128xf32>
    %cst_47 = arith.constant 1.000000e+00 : f32
    %84 = vector.broadcast %cst_47 : f32 to vector<16x128xf32>
    %85 = arith.addf %84, %83 : vector<16x128xf32>
    %86 = tpu.reciprocal %85 {approx = true} : vector<16x128xf32> -> vector<16x128xf32>
    %87 = arith.mulf %79, %86 : vector<16x128xf32>
    %cst_48 = arith.constant dense<0.000000e+00> : vector<32x128xf32>
    %88 = tpu.matmul %21, %87, %cst_48 {dimension_numbers = #tpu.dot_dimension_numbers<[1], [0], [0], [1], [0, 0, 1, 1], [], []>} : vector<32x16xf32>, vector<16x128xf32>, vector<32x128xf32> -> vector<32x128xf32>
    %89 = vector.broadcast %22 : vector<32x1xf32> to vector<32x128xf32>
    %90 = arith.addf %88, %89 : vector<32x128xf32>
    %91 = vector.extract_strided_slice %90 {offsets = [0, 0], sizes = [16, 128], strides = [1, 1]} : vector<32x128xf32> to vector<16x128xf32>
    %92 = arith.addf %91, %64 : vector<16x128xf32>
    %cst_49 = arith.constant 5.000000e-01 : f32
    %93 = vector.broadcast %cst_49 : f32 to vector<16x128xf32>
    %94 = arith.mulf %92, %93 : vector<16x128xf32>
    %c1_50 = arith.constant 1 : index
    %c0_51 = arith.constant 0 : index
    %c0_52 = arith.constant 0 : index
    %95 = vector.load %arg8[%c1_50, %c0_51, %c0_52] : memref<2x16x128xf32, #tpu.memory_space<vmem>>, vector<1x16x128xf32>
    %96 = vector.shape_cast %95 : vector<1x16x128xf32> to vector<16x128xf32>
    %97 = vector.shape_cast %94 : vector<16x128xf32> to vector<1x16x128xf32>
    tpu.vector_store %arg8[%c1_50, %c0_51, %c0_52], %97 {strides = array<i32>} : memref<2x16x128xf32, #tpu.memory_space<vmem>>, vector<1x16x128xf32>,
    %98 = vector.extract_strided_slice %90 {offsets = [16, 0], sizes = [16, 128], strides = [1, 1]} : vector<32x128xf32> to vector<16x128xf32>
    %c1_53 = arith.constant 1 : index
    %c0_54 = arith.constant 0 : index
    %c0_55 = arith.constant 0 : index
    %99 = vector.load %arg9[%c1_53, %c0_54, %c0_55] : memref<2x16x128xf32, #tpu.memory_space<vmem>>, vector<1x16x128xf32>
    %100 = vector.shape_cast %99 : vector<1x16x128xf32> to vector<16x128xf32>
    %101 = vector.shape_cast %98 : vector<16x128xf32> to vector<1x16x128xf32>
    tpu.vector_store %arg9[%c1_53, %c0_54, %c0_55], %101 {strides = array<i32>} : memref<2x16x128xf32, #tpu.memory_space<vmem>>, vector<1x16x128xf32>,
    return
  }
  func.func @transform_0(%arg0: i32) -> (i32, i32, i32) {
    %c0_i32 = arith.constant 0 : i32
    %c0_i32_0 = arith.constant 0 : i32
    %c0_i32_1 = arith.constant 0 : i32
    return %arg0, %c0_i32, %c0_i32_0 : i32, i32, i32
  }
  func.func @transform_1(%arg0: i32) -> (i32, i32, i32) {
    %c0_i32 = arith.constant 0 : i32
    %c0_i32_0 = arith.constant 0 : i32
    %c0_i32_1 = arith.constant 0 : i32
    return %arg0, %c0_i32, %c0_i32_0 : i32, i32, i32
  }
  func.func @transform_2(%arg0: i32) -> (i32, i32) {
    %c0_i32 = arith.constant 0 : i32
    %c0_i32_0 = arith.constant 0 : i32
    %c0_i32_1 = arith.constant 0 : i32
    return %c0_i32, %c0_i32_0 : i32, i32
  }
  func.func @transform_3(%arg0: i32) -> (i32, i32) {
    %c0_i32 = arith.constant 0 : i32
    %c0_i32_0 = arith.constant 0 : i32
    %c0_i32_1 = arith.constant 0 : i32
    return %c0_i32, %c0_i32_0 : i32, i32
  }
  func.func @transform_4(%arg0: i32) -> (i32, i32) {
    %c0_i32 = arith.constant 0 : i32
    %c0_i32_0 = arith.constant 0 : i32
    %c0_i32_1 = arith.constant 0 : i32
    return %c0_i32, %c0_i32_0 : i32, i32
  }
  func.func @transform_5(%arg0: i32) -> (i32, i32) {
    %c0_i32 = arith.constant 0 : i32
    %c0_i32_0 = arith.constant 0 : i32
    %c0_i32_1 = arith.constant 0 : i32
    return %c0_i32, %c0_i32_0 : i32, i32
  }
  func.func @transform_6(%arg0: i32) -> (i32, i32) {
    %c0_i32 = arith.constant 0 : i32
    %c0_i32_0 = arith.constant 0 : i32
    %c0_i32_1 = arith.constant 0 : i32
    return %c0_i32, %c0_i32_0 : i32, i32
  }
  func.func @transform_7(%arg0: i32) -> (i32, i32, i32) {
    %c0_i32 = arith.constant 0 : i32
    %c0_i32_0 = arith.constant 0 : i32
    %c0_i32_1 = arith.constant 0 : i32
    return %arg0, %c0_i32, %c0_i32_0 : i32, i32, i32
  }
  func.func @transform_8(%arg0: i32) -> (i32, i32, i32) {
    %c0_i32 = arith.constant 0 : i32
    %c0_i32_0 = arith.constant 0 : i32
    %c0_i32_1 = arith.constant 0 : i32
    return %arg0, %c0_i32, %c0_i32_0 : i32, i32, i32
  }
}

</mosaic_0001>

<llo_original>
// kernel: tpu_custom_call.1
$region0: #{tpu_custom_call.1}
  #allocation0 [shape = 'u32[]', space=smem, size = 0x4, offset = 0x4, fixed_abs, tag = 'smem constant byte address 0x4 - core index']
  #allocation1 [shape = 'u32[72,128]{1,0:T(1,128)}', space=vmem, size = 0x9000, scoped, tag = 'internal scratch']
  %s0 = inlined_call_operand.vmem [shape: f32[4,16,128], index: 0, kind: input, shape index: {}]
  %s1 = inlined_call_operand.vmem [shape: f32[4,9,8], index: 1, kind: input, shape index: {}]
  %s2 = inlined_call_operand.vmem [shape: f32[8,128], index: 2, kind: input, shape index: {}]
  %s3 = inlined_call_operand.vmem [shape: f32[32,48], index: 3, kind: input, shape index: {}]
  %s4 = inlined_call_operand.vmem [shape: f32[32,9], index: 4, kind: input, shape index: {}]
  %s5 = inlined_call_operand.vmem [shape: f32[32,16], index: 5, kind: input, shape index: {}]
  %s6 = inlined_call_operand.vmem [shape: f32[32,1], index: 6, kind: input, shape index: {}]
  %s7 = inlined_call_operand.hbm [shape: f32[4,16,128], index: 7, kind: output, shape index: {0}]
  %s8 = inlined_call_operand.hbm [shape: f32[4,16,128], index: 8, kind: output, shape index: {1}]
  %9 = xla_tuple %s7, %s8
  %s10 = sld [smem:[#allocation0]]
  $region69: #{tpu_custom_call.1} parent=0
    _
  %s12 = ssub.s32 1, %s10
  %s13 = scalar_select 0, %s12, %s10
  $region1: #{tpu_custom_call.1} parent=0
    #allocation2 [shape = 'u8[32768]{0}', space=vmem, size = 0x8000, scoped, tag = 'output window, operand 0']
    #allocation3 [shape = 's32[2]{0}', space=sflag, size = 0x8, scoped, tag = 'scoped memory for tpu_custom_call.1']
    #allocation4 [shape = 'u8[32768]{0}', space=vmem, size = 0x8000, scoped, tag = 'output window, operand 1']
    #allocation5 [shape = 's32[2]{0}', space=sflag, size = 0x8, scoped, tag = 'scoped memory for tpu_custom_call.1']
    %14 = vsyncpa [#allocation3], 0
    %s15 = scalar_lea.sflag [#allocation3], 1
    %16 = vsyncpa %s15, 0
    %17 = vsyncpa [#allocation5], 0
    %s18 = scalar_lea.sflag [#allocation5], 1
    %19 = vsyncpa %s18, 0
    loop: start=0, step=1, limit=4
    $region2: #{tpu_custom_call.1} parent=1 // loop_pre_header
      _
    $region3: #{tpu_custom_call.1} parent=1 // loop_header
      %s21 = sphi 0, %s25
      %p22 = scmp.ge.s32.totalorder %s21, 4
      %s31 = sphi 0, %s33
      %s34 = sphi 0, %s31
      %s35 = sphi 0, %s34
      %s51 = sphi 0, %s35
      %s57 = sphi 0, %s59
      %s60 = sphi 0, %s57
      %s61 = sphi 0, %s60
      %s77 = sphi 0, %s61
      %s81 = sphi 0, %s81
      %s83 = sphi 0, %s81
      %s84 = sphi 0, %s83
      %s98 = sphi 0, %s84
      %s102 = sphi 0, %s102
      %s104 = sphi 0, %s102
      %s105 = sphi 0, %s104
      %s119 = sphi 0, %s105
      %s123 = sphi 0, %s123
      %s125 = sphi 0, %s123
      %s126 = sphi 0, %s125
      %s140 = sphi 0, %s126
      %s144 = sphi 0, %s144
      %s146 = sphi 0, %s144
      %s147 = sphi 0, %s146
      %s161 = sphi 0, %s147
      %s165 = sphi 0, %s165
      %s167 = sphi 0, %s165
      %s168 = sphi 0, %s167
      %s182 = sphi 0, %s168
      %s188 = sphi 0, %s190
      %s191 = sphi 0, %s188
      %s192 = sphi 0, %s191
      %s208 = sphi 0, %s192
      %s214 = sphi 0, %s216
      %s217 = sphi 0, %s214
      %s218 = sphi 0, %s217
      %s234 = sphi 0, %s218
    $region4: #{tpu_custom_call.1} parent=1 // loop_header_branch
      %24 = sbr.rel (%p22) target = $region8
    $region5: #{tpu_custom_call.1} parent=1 // loop_body
      %s26 = ssub.s32 %s21, 1
      %s27 = ssub.s32 %s21, 2
      %s28 = sadd.s32 %s21, 1
      %s29 = ssub.s32 %s21, %s28
      %p30 = scmp.eq.s32.totalorder %s29, 0
      %s32 = sadd.s32 %s31, 1
      %s33 = scalar_select %p30, %s31, %s32
      %p36 = pneg %p30
      %p37 = scmp.eq.s32.totalorder %s21, 1
      %p38 = por %p36, %p37
      %p39 = scmp.ne.s32.totalorder %s31, %s34
      %p40 = scmp.eq.s32.totalorder %s21, 0
      %p41 = por %p39, %p40
      %p42 = scmp.ne.s32.totalorder %s31, %s34
      %p43 = scmp.eq.s32.totalorder %s26, 1
      %p44 = por %p42, %p43
      %p45 = scmp.ne.s32.totalorder %s34, %s35
      %p46 = scmp.eq.s32.totalorder %s26, 0
      %p47 = por %p45, %p46
      %p48 = scmp.ne.s32.totalorder %s34, %s35
      %p49 = scmp.eq.s32.totalorder %s27, 1
      %p50 = por %p48, %p49
      %p52 = scmp.ne.s32.totalorder %s35, %s51
      %p53 = scmp.eq.s32.totalorder %s27, 0
      %p54 = por %p52, %p53
      %s55 = ssub.s32 %s21, %s28
      %p56 = scmp.eq.s32.totalorder %s55, 0
      %s58 = sadd.s32 %s57, 1
      %s59 = scalar_select %p56, %s57, %s58
      %p62 = pneg %p56
      %p63 = scmp.eq.s32.totalorder %s21, 1
      %p64 = por %p62, %p63
      %p65 = scmp.ne.s32.totalorder %s57, %s60
      %p66 = scmp.eq.s32.totalorder %s21, 0
      %p67 = por %p65, %p66
      %p68 = scmp.ne.s32.totalorder %s57, %s60
      %p69 = scmp.eq.s32.totalorder %s26, 1
      %p70 = por %p68, %p69
      %p71 = scmp.ne.s32.totalorder %s60, %s61
      %p72 = scmp.eq.s32.totalorder %s26, 0
      %p73 = por %p71, %p72
      %p74 = scmp.ne.s32.totalorder %s60, %s61
      %p75 = scmp.eq.s32.totalorder %s27, 1
      %p76 = por %p74, %p75
      %p78 = scmp.ne.s32.totalorder %s61, %s77
      %p79 = scmp.eq.s32.totalorder %s27, 0
      %p80 = por %p78, %p79
      %s82 = sadd.s32 %s81, 1
      %p85 = scmp.eq.s32.totalorder %s21, 1
      %p86 = scmp.ne.s32.totalorder %s81, %s83
      %p87 = scmp.eq.s32.totalorder %s21, 0
      %p88 = por %p86, %p87
      %p89 = scmp.ne.s32.totalorder %s81, %s83
      %p90 = scmp.eq.s32.totalorder %s26, 1
      %p91 = por %p89, %p90
      %p92 = scmp.ne.s32.totalorder %s83, %s84
      %p93 = scmp.eq.s32.totalorder %s26, 0
      %p94 = por %p92, %p93
      %p95 = scmp.ne.s32.totalorder %s83, %s84
      %p96 = scmp.eq.s32.totalorder %s27, 1
      %p97 = por %p95, %p96
      %p99 = scmp.ne.s32.totalorder %s84, %s98
      %p100 = scmp.eq.s32.totalorder %s27, 0
      %p101 = por %p99, %p100
      %s103 = sadd.s32 %s102, 1
      %p106 = scmp.eq.s32.totalorder %s21, 1
      %p107 = scmp.ne.s32.totalorder %s102, %s104
      %p108 = scmp.eq.s32.totalorder %s21, 0
      %p109 = por %p107, %p108
      %p110 = scmp.ne.s32.totalorder %s102, %s104
      %p111 = scmp.eq.s32.totalorder %s26, 1
      %p112 = por %p110, %p111
      %p113 = scmp.ne.s32.totalorder %s104, %s105
      %p114 = scmp.eq.s32.totalorder %s26, 0
      %p115 = por %p113, %p114
      %p116 = scmp.ne.s32.totalorder %s104, %s105
      %p117 = scmp.eq.s32.totalorder %s27, 1
      %p118 = por %p116, %p117
      %p120 = scmp.ne.s32.totalorder %s105, %s119
      %p121 = scmp.eq.s32.totalorder %s27, 0
      %p122 = por %p120, %p121
      %s124 = sadd.s32 %s123, 1
      %p127 = scmp.eq.s32.totalorder %s21, 1
      %p128 = scmp.ne.s32.totalorder %s123, %s125
      %p129 = scmp.eq.s32.totalorder %s21, 0
      %p130 = por %p128, %p129
      %p131 = scmp.ne.s32.totalorder %s123, %s125
      %p132 = scmp.eq.s32.totalorder %s26, 1
      %p133 = por %p131, %p132
      %p134 = scmp.ne.s32.totalorder %s125, %s126
      %p135 = scmp.eq.s32.totalorder %s26, 0
      %p136 = por %p134, %p135
      %p137 = scmp.ne.s32.totalorder %s125, %s126
      %p138 = scmp.eq.s32.totalorder %s27, 1
      %p139 = por %p137, %p138
      %p141 = scmp.ne.s32.totalorder %s126, %s140
      %p142 = scmp.eq.s32.totalorder %s27, 0
      %p143 = por %p141, %p142
      %s145 = sadd.s32 %s144, 1
      %p148 = scmp.eq.s32.totalorder %s21, 1
      %p149 = scmp.ne.s32.totalorder %s144, %s146
      %p150 = scmp.eq.s32.totalorder %s21, 0
      %p151 = por %p149, %p150
      %p152 = scmp.ne.s32.totalorder %s144, %s146
      %p153 = scmp.eq.s32.totalorder %s26, 1
      %p154 = por %p152, %p153
      %p155 = scmp.ne.s32.totalorder %s146, %s147
      %p156 = scmp.eq.s32.totalorder %s26, 0
      %p157 = por %p155, %p156
      %p158 = scmp.ne.s32.totalorder %s146, %s147
      %p159 = scmp.eq.s32.totalorder %s27, 1
      %p160 = por %p158, %p159
      %p162 = scmp.ne.s32.totalorder %s147, %s161
      %p163 = scmp.eq.s32.totalorder %s27, 0
      %p164 = por %p162, %p163
      %s166 = sadd.s32 %s165, 1
      %p169 = scmp.eq.s32.totalorder %s21, 1
      %p170 = scmp.ne.s32.totalorder %s165, %s167
      %p171 = scmp.eq.s32.totalorder %s21, 0
      %p172 = por %p170, %p171
      %p173 = scmp.ne.s32.totalorder %s165, %s167
      %p174 = scmp.eq.s32.totalorder %s26, 1
      %p175 = por %p173, %p174
      %p176 = scmp.ne.s32.totalorder %s167, %s168
      %p177 = scmp.eq.s32.totalorder %s26, 0
      %p178 = por %p176, %p177
      %p179 = scmp.ne.s32.totalorder %s167, %s168
      %p180 = scmp.eq.s32.totalorder %s27, 1
      %p181 = por %p179, %p180
      %p183 = scmp.ne.s32.totalorder %s168, %s182
      %p184 = scmp.eq.s32.totalorder %s27, 0
      %p185 = por %p183, %p184
      %s186 = ssub.s32 %s21, %s28
      %p187 = scmp.eq.s32.totalorder %s186, 0
      %s189 = sadd.s32 %s188, 1
      %s190 = scalar_select %p187, %s188, %s189
      %p193 = pneg %p187
      %p194 = scmp.eq.s32.totalorder %s21, 1
      %p195 = por %p193, %p194
      %p196 = scmp.ne.s32.totalorder %s188, %s191
      %p197 = scmp.eq.s32.totalorder %s21, 0
      %p198 = por %p196, %p197
      %p199 = scmp.ne.s32.totalorder %s188, %s191
      %p200 = scmp.eq.s32.totalorder %s26, 1
      %p201 = por %p199, %p200
      %p202 = scmp.ne.s32.totalorder %s191, %s192
      %p203 = scmp.eq.s32.totalorder %s26, 0
      %p204 = por %p202, %p203
      %p205 = scmp.ne.s32.totalorder %s191, %s192
      %p206 = scmp.eq.s32.totalorder %s27, 1
      %p207 = por %p205, %p206
      %p209 = scmp.ne.s32.totalorder %s192, %s208
      %p210 = scmp.eq.s32.totalorder %s27, 0
      %p211 = por %p209, %p210
      %s212 = ssub.s32 %s21, %s28
      %p213 = scmp.eq.s32.totalorder %s212, 0
      %s215 = sadd.s32 %s214, 1
      %s216 = scalar_select %p213, %s214, %s215
      %p219 = pneg %p213
      %p220 = scmp.eq.s32.totalorder %s21, 1
      %p221 = por %p219, %p220
      %p222 = scmp.ne.s32.totalorder %s214, %s217
      %p223 = scmp.eq.s32.totalorder %s21, 0
      %p224 = por %p222, %p223
      %p225 = scmp.ne.s32.totalorder %s214, %s217
      %p226 = scmp.eq.s32.totalorder %s26, 1
      %p227 = por %p225, %p226
      %p228 = scmp.ne.s32.totalorder %s217, %s218
      %p229 = scmp.eq.s32.totalorder %s26, 0
      %p230 = por %p228, %p229
      %p231 = scmp.ne.s32.totalorder %s217, %s218
      %p232 = scmp.eq.s32.totalorder %s27, 1
      %p233 = por %p231, %p232
      %p235 = scmp.ne.s32.totalorder %s218, %s234
      %p236 = scmp.eq.s32.totalorder %s27, 0
      %p237 = por %p235, %p236
      %p238 = scmp.le.s32.totalorder 1, %s21
      %p239 = scmp.lt.s32.totalorder %s21, 3
      %p240 = pnand %p238, %p239
      %p241 = pneg %p240
      // Predicated region
      $region9: #{tpu_custom_call.1} parent=5 // pred_check
        _
      $region10: #{tpu_custom_call.1} parent=5 // pred_check_branch
        %243 = sbr.rel (%p240) target = $region12
      $region11: #{tpu_custom_call.1} parent=5 // pred_region
        %s244 = ssub.s32 %s21, 1
        // Predicated region
        $region13: #{tpu_custom_call.1} parent=11 // pred_check
          %p245 = pneg %p94
        $region14: #{tpu_custom_call.1} parent=11 // pred_check_branch
          %247 = sbr.rel (%p245) target = $region16
        $region15: #{tpu_custom_call.1} parent=11 // pred_region
          _
        $region16: #{tpu_custom_call.1} parent=11 // pred_fallthru
          _
        // Predicated region
        $region17: #{tpu_custom_call.1} parent=11 // pred_check
          %p248 = pneg %p115
        $region18: #{tpu_custom_call.1} parent=11 // pred_check_branch
          %250 = sbr.rel (%p248) target = $region20
        $region19: #{tpu_custom_call.1} parent=11 // pred_region
          _
        $region20: #{tpu_custom_call.1} parent=11 // pred_fallthru
          _
        // Predicated region
        $region21: #{tpu_custom_call.1} parent=11 // pred_check
          %p251 = pneg %p136
        $region22: #{tpu_custom_call.1} parent=11 // pred_check_branch
          %253 = sbr.rel (%p251) target = $region24
        $region23: #{tpu_custom_call.1} parent=11 // pred_region
          _
        $region24: #{tpu_custom_call.1} parent=11 // pred_fallthru
          _
        // Predicated region
        $region25: #{tpu_custom_call.1} parent=11 // pred_check
          %p254 = pneg %p157
        $region26: #{tpu_custom_call.1} parent=11 // pred_check_branch
          %256 = sbr.rel (%p254) target = $region28
        $region27: #{tpu_custom_call.1} parent=11 // pred_region
          _
        $region28: #{tpu_custom_call.1} parent=11 // pred_fallthru
          _
        // Predicated region
        $region29: #{tpu_custom_call.1} parent=11 // pred_check
          %p257 = pneg %p178
        $region30: #{tpu_custom_call.1} parent=11 // pred_check_branch
          %259 = sbr.rel (%p257) target = $region32
        $region31: #{tpu_custom_call.1} parent=11 // pred_region
          _
        $region32: #{tpu_custom_call.1} parent=11 // pred_fallthru
          _
      $region12: #{tpu_custom_call.1} parent=5 // pred_fallthru
        _
      %p260 = scmp.lt.s32.totalorder %s21, 2
      // Predicated region
      $region33: #{tpu_custom_call.1} parent=5 // pred_check
        %p261 = pneg %p260
      $region34: #{tpu_custom_call.1} parent=5 // pred_check_branch
        %263 = sbr.rel (%p261) target = $region36
      $region35: #{tpu_custom_call.1} parent=5 // pred_region
        // Predicated region
        $region37: #{tpu_custom_call.1} parent=35 // pred_check
          %p264 = pneg %p41
        $region38: #{tpu_custom_call.1} parent=35 // pred_check_branch
          %266 = sbr.rel (%p264) target = $region40
        $region39: #{tpu_custom_call.1} parent=35 // pred_region
          %s267 = smul.u32 2, %s21
          %p268 = scmp.lt.s32.totalorder %s267, 3
          %s269 = scalar_select %p268, %s267, 3
          %s270 = smul.addr %s269, 2
          %s271 = smul.addr %s270, 8
          %s272 = scalar_lea.vmem %s0, %s271
          %s273 = smul.u32 2, %s21
        $region40: #{tpu_custom_call.1} parent=35 // pred_fallthru
          _
        // Predicated region
        $region41: #{tpu_custom_call.1} parent=35 // pred_check
          %p274 = pneg %p67
        $region42: #{tpu_custom_call.1} parent=35 // pred_check_branch
          %276 = sbr.rel (%p274) target = $region44
        $region43: #{tpu_custom_call.1} parent=35 // pred_region
          %s277 = smul.u32 2, %s21
          %p278 = scmp.lt.s32.totalorder %s277, 3
          %s279 = scalar_select %p278, %s277, 3
          %s280 = smul.addr %s279, 2
          %s281 = smul.addr %s280, 8
          %s282 = scalar_lea.vmem %s1, %s281
          %s283 = smul.u32 2, %s21
        $region44: #{tpu_custom_call.1} parent=35 // pred_fallthru
          _
      $region36: #{tpu_custom_call.1} parent=5 // pred_fallthru
        _
      %p284 = scmp.le.s32.totalorder 1, %s21
      %p285 = scmp.lt.s32.totalorder %s21, 3
      %p286 = pnand %p284, %p285
      %p287 = pneg %p286
      // Predicated region
      $region45: #{tpu_custom_call.1} parent=5 // pred_check
        _
      $region46: #{tpu_custom_call.1} parent=5 // pred_check_branch
        %289 = sbr.rel (%p286) target = $region48
      $region47: #{tpu_custom_call.1} parent=5 // pred_region
        %s290 = ssub.s32 %s21, 1
        %s291 = smul.u32 2, %s26
        %p292 = scmp.lt.s32.totalorder %s291, 3
        %s293 = scalar_select %p292, %s291, 3
        %s294 = smul.addr %s293, 2
        %s295 = smul.addr %s294, 8
        %s296 = scalar_lea.vmem %s0, %s295
        %p297 = pneg %p47
        %p298 = pneg %p44
        %s299 = smul.u32 2, %s26
        %p300 = scmp.lt.s32.totalorder %s299, 3
        %s301 = scalar_select %p300, %s299, 3
        %s302 = smul.addr %s301, 2
        %s303 = smul.addr %s302, 8
        %s304 = scalar_lea.vmem %s1, %s303
        %p305 = pneg %p73
        %p306 = pneg %p70
        %p307 = pneg %p94
        %p308 = pneg %p91
        %p309 = pneg %p115
        %p310 = pneg %p112
        %p311 = pneg %p136
        %p312 = pneg %p133
        %p313 = pneg %p157
        %p314 = pneg %p154
        %p315 = pneg %p178
        %p316 = pneg %p175
        %p317 = pneg %p204
        %p318 = pneg %p201
        %s319 = sand.u32 %s191, 1
        %s320 = scalar_lea.sflag [#allocation3], %s319
        %s321 = sand.u32 %s191, 1
        %s322 = smul.addr %s321, 32
        %s323 = scalar_lea.vmem [#allocation2], %s322
        %p324 = pneg %p230
        %p325 = pneg %p227
        %s326 = sand.u32 %s217, 1
        %s327 = scalar_lea.sflag [#allocation5], %s326
        %s328 = sand.u32 %s217, 1
        %s329 = smul.addr %s328, 32
        %s330 = scalar_lea.vmem [#allocation4], %s329
        %s331 = smul.u32 2, %s26
        %p332 = scmp.lt.s32.totalorder %s331, 3
        %s333 = scalar_select %p332, %s331, 3
        %s334 = smul.addr %s333, 2
        %s335 = smul.addr %s334, 8
        %s336 = scalar_lea.vmem %s0, %s335
        %s337 = smul.u32 2, %s26
        %s338 = smul.u32 2, %s26
        %p339 = scmp.lt.s32.totalorder %s338, 3
        %s340 = scalar_select %p339, %s338, 3
        %s341 = smul.addr %s340, 2
        %s342 = smul.addr %s341, 8
        %s343 = scalar_lea.vmem %s1, %s342
        %s344 = smul.u32 2, %s26
        %s345 = smul.u32 2, %s26
        %s346 = smul.u32 2, %s26
        %v347 = vlaneseq
        %v348 = vand.u32 %v347, 127
        %v349 = vadd.s32 %v348, 4294967295
        %vm350 = vcmp.ge.s32.totalorder %v349, 0
        %vm351 = vcmp.lt.s32.totalorder %v349, 128
        %vm352 = vmand %vm350, %vm351
        %v353 = vadd.s32 %v348, 1
        %vm354 = vcmp.ge.s32.totalorder %v353, 0
        %vm355 = vcmp.lt.s32.totalorder %v353, 128
        %vm356 = vmand %vm354, %vm355
        %v357 = vld [vmem:[%s3] sm:$0xff]
        %v358 = vld [vmem:[%s3 + $0x8] sm:$0xff]
        %v359 = vld [vmem:[%s3 + $0x10] sm:$0xff]
        %v360 = vld [vmem:[%s3 + $0x18] sm:$0xff]
        %v361 = vld [vmem:[%s4] sm:$0xff]
        %v362 = vld [vmem:[%s4 + $0x8] sm:$0xff]
        %v363 = vld [vmem:[%s4 + $0x10] sm:$0xff]
        %v364 = vld [vmem:[%s4 + $0x18] sm:$0xff]
        %v365 = vld [vmem:[%s5] sm:$0xff]
        %v366 = vld [vmem:[%s5 + $0x8] sm:$0xff]
        %v367 = vld [vmem:[%s5 + $0x10] sm:$0xff]
        %v368 = vld [vmem:[%s5 + $0x18] sm:$0xff]
        %v369 = vld [vmem:[%s6] sm:$0xff]
        %v370 = vld [vmem:[%s6 + $0x8] sm:$0xff]
        %v371 = vld [vmem:[%s6 + $0x10] sm:$0xff]
        %v372 = vld [vmem:[%s6 + $0x18] sm:$0xff]
        %v373 = vld [vmem:[%s2] sm:$0xff]
        %v374 = vld [vmem:[%s336] sm:$0xff]
        %v375 = vld [vmem:[%s336 + $0x8] sm:$0xff]
        %376 = vrot.lane.b32.xlu0 %v374, 1
        %v377 = vpop.permute.xlu0 %376
        %378 = vrot.lane.b32.xlu0 %v375, 1
        %v379 = vpop.permute.xlu0 %378
        %v380 = vsel %vm352, %v377, 0.0
        %v381 = vsel %vm352, %v379, 0.0
        %382 = vrot.lane.b32.xlu0 %v374, 127
        %v383 = vpop.permute.xlu0 %382
        %384 = vrot.lane.b32.xlu0 %v375, 127
        %v385 = vpop.permute.xlu0 %384
        %v386 = vsel %vm356, %v383, 0.0
        %v387 = vsel %vm356, %v385, 0.0
        %v388 = vld [vmem:[%s343] sm:$0xff]
        %v389 = vld [vmem:[%s343 + $0x8] sm:$0x1]
        %vm390 = vcmask 72704
        %v392 = vsel %vm390, %v361, 0
        %v395 = vsel %vm390, %v362, 0
        %v398 = vsel %vm390, %v363, 0
        %v401 = vsel %vm390, %v364, 0
        %vm403 = vcmask 1040384
        %v405 = vsel %vm403, %v389, 0
        %407 = vmatpush.msra.mxu0 0.0
        %408 = vmatpush.msra.mxu0 0.0
        %409 = vmatpush.msra.mxu0 0.0
        %410 = vmatpush.msra.mxu0 0.0
        %411 = vmatpush.msra.mxu0 0.0
        %412 = vmatpush.msra.mxu0 0.0
        %413 = vmatpush.msra.mxu0 0.0
        %414 = vmatpush.msra.mxu0 0.0
        %415 = vmatpush.msra.mxu0 0.0
        %416 = vmatpush.msra.mxu0 0.0
        %417 = vmatpush.msra.mxu0 0.0
        %418 = vmatpush.msra.mxu0 0.0
        %419 = vmatpush.msra.mxu0 0.0
        %420 = vmatpush.msra.mxu0 0.0
        %421 = vmatpush.msra.mxu0 %v405
        %422 = vmatpush.msra.mxu0 %v388
        %423 = vmatmul.f32.gmra.mxu0 %v392
        %v424 = vpop.f32.mrf.mxu0
        %v425 = vadd.f32 0.0, %v424
        %426 = vmatmul.f32.gmra.mxu0 %v395
        %v427 = vpop.f32.mrf.mxu0
        %v428 = vadd.f32 0.0, %v427
        %429 = vmatmul.f32.gmra.mxu0 %v398
        %v430 = vpop.f32.mrf.mxu0
        %v431 = vadd.f32 0.0, %v430
        %432 = vmatmul.f32.gmra.mxu0 %v401
        %v433 = vpop.f32.mrf.mxu0
        %v434 = vadd.f32 0.0, %v433
        %435 = vdwg.mxu0
        %vm436 = vcmask 64512
        %v438 = vsel %vm436, %v425, 0
        %v441 = vsel %vm436, %v428, 0
        %v444 = vsel %vm436, %v431, 0
        %v447 = vsel %vm436, %v434, 0
        %449 = vmatpush.msra.mxu0 0.0
        %450 = vmatpush.msra.mxu0 0.0
        %451 = vmatpush.msra.mxu0 0.0
        %452 = vmatpush.msra.mxu0 0.0
        %453 = vmatpush.msra.mxu0 0.0
        %454 = vmatpush.msra.mxu0 0.0
        %455 = vmatpush.msra.mxu0 0.0
        %456 = vmatpush.msra.mxu0 0.0
        %457 = vmatpush.msra.mxu0 0.0
        %458 = vmatpush.msra.mxu0 0.0
        %459 = vmatpush.msra.mxu0 0.0
        %460 = vmatpush.msra.mxu0 0.0
        %461 = vmatpush.msra.mxu0 0.0
        %462 = vmatpush.msra.mxu0 0.0
        %463 = vmatpush.msra.mxu0 0.0
        %464 = vmatpush.msra.mxu0 %v373
        %465 = vmatmul.f32.gmra.mxu0 %v438
        %v466 = vpop.f32.mrf.mxu0
        %v467 = vadd.f32 0.0, %v466
        %468 = vmatmul.f32.gmra.mxu0 %v441
        %v469 = vpop.f32.mrf.mxu0
        %v470 = vadd.f32 0.0, %v469
        %471 = vmatmul.f32.gmra.mxu0 %v444
        %v472 = vpop.f32.mrf.mxu0
        %v473 = vadd.f32 0.0, %v472
        %474 = vmatmul.f32.gmra.mxu0 %v447
        %v475 = vpop.f32.mrf.mxu0
        %v476 = vadd.f32 0.0, %v475
        %477 = vdwg.mxu0
        %vm478 = vcmask 392192
        %v480 = vsel %vm478, %v357, 0
        %v483 = vsel %vm478, %v358, 0
        %v486 = vsel %vm478, %v359, 0
        %v489 = vsel %vm478, %v360, 0
        %491 = vmatpush.msra.mxu0 0.0
        %492 = vmatpush.msra.mxu0 0.0
        %493 = vmatpush.msra.mxu0 0.0
        %494 = vmatpush.msra.mxu0 0.0
        %495 = vmatpush.msra.mxu0 0.0
        %496 = vmatpush.msra.mxu0 0.0
        %497 = vmatpush.msra.mxu0 0.0
        %498 = vmatpush.msra.mxu0 0.0
        %499 = vmatpush.msra.mxu0 0.0
        %500 = vmatpush.msra.mxu0 0.0
        %501 = vmatpush.msra.mxu0 %v387
        %502 = vmatpush.msra.mxu0 %v386
        %503 = vmatpush.msra.mxu0 %v375
        %504 = vmatpush.msra.mxu0 %v374
        %505 = vmatpush.msra.mxu0 %v381
        %506 = vmatpush.msra.mxu0 %v380
        %507 = vmatmul.f32.gmra.mxu0 %v480
        %v508 = vpop.f32.mrf.mxu0
        %v509 = vadd.f32 %v467, %v508
        %510 = vmatmul.f32.gmra.mxu0 %v483
        %v511 = vpop.f32.mrf.mxu0
        %v512 = vadd.f32 %v470, %v511
        %513 = vmatmul.f32.gmra.mxu0 %v486
        %v514 = vpop.f32.mrf.mxu0
        %v515 = vadd.f32 %v473, %v514
        %516 = vmatmul.f32.gmra.mxu0 %v489
        %v517 = vpop.f32.mrf.mxu0
        %v518 = vadd.f32 %v476, %v517
        %519 = vdwg.mxu0
        %v520 = vtanh.pop %v509
        %v521 = vtanh.pop %v512
        %v522 = vsub.f32 0.0, %v515
        %v523 = vsub.f32 0.0, %v518
        %v524 = vmul.f32 %v522, 1.442695
        %v525 = vpow.pop %v524
        %v526 = vmul.f32 %v523, 1.442695
        %v527 = vpow.pop %v526
        %v528 = vadd.f32 %v525, 1.0
        %v529 = vadd.f32 %v527, 1.0
        %v530 = vrcp.pop %v528
        %v531 = vrcp.pop %v529
        %v532 = vmul.f32 %v520, %v530
        %v533 = vmul.f32 %v521, %v531
        %535 = vset.pattern.permute.xlu0 0
        %536 = vperm.xlu0 %535, %v369
        %v537 = vpop.permute.xlu0 %536
        %540 = vset.pattern.permute.xlu0 0
        %541 = vperm.xlu0 %540, %v370
        %v542 = vpop.permute.xlu0 %541
        %545 = vset.pattern.permute.xlu0 0
        %546 = vperm.xlu0 %545, %v371
        %v547 = vpop.permute.xlu0 %546
        %550 = vset.pattern.permute.xlu0 0
        %551 = vperm.xlu0 %550, %v372
        %v552 = vpop.permute.xlu0 %551
        %vm554 = vcmask 130048
        %v556 = vsel %vm554, %v365, 0
        %v559 = vsel %vm554, %v366, 0
        %v562 = vsel %vm554, %v367, 0
        %v565 = vsel %vm554, %v368, 0
        %567 = vmatpush.msra.mxu0 0.0
        %568 = vmatpush.msra.mxu0 0.0
        %569 = vmatpush.msra.mxu0 0.0
        %570 = vmatpush.msra.mxu0 0.0
        %571 = vmatpush.msra.mxu0 0.0
        %572 = vmatpush.msra.mxu0 0.0
        %573 = vmatpush.msra.mxu0 0.0
        %574 = vmatpush.msra.mxu0 0.0
        %575 = vmatpush.msra.mxu0 0.0
        %576 = vmatpush.msra.mxu0 0.0
        %577 = vmatpush.msra.mxu0 0.0
        %578 = vmatpush.msra.mxu0 0.0
        %579 = vmatpush.msra.mxu0 0.0
        %580 = vmatpush.msra.mxu0 0.0
        %581 = vmatpush.msra.mxu0 %v533
        %582 = vmatpush.msra.mxu0 %v532
        %583 = vmatmul.f32.gmra.mxu0 %v556
        %v584 = vpop.f32.mrf.mxu0
        %v585 = vadd.f32 %v537, %v584
        %586 = vmatmul.f32.gmra.mxu0 %v559
        %v587 = vpop.f32.mrf.mxu0
        %v588 = vadd.f32 %v542, %v587
        %589 = vmatmul.f32.gmra.mxu0 %v562
        %v590 = vpop.f32.mrf.mxu0
        %v591 = vadd.f32 %v547, %v590
        %592 = vmatmul.f32.gmra.mxu0 %v565
        %v593 = vpop.f32.mrf.mxu0
        %v594 = vadd.f32 %v552, %v593
        %595 = vdwg.mxu0
        %v596 = vadd.f32 %v585, %v374
        %v597 = vadd.f32 %v588, %v375
        %v598 = vmul.f32 %v596, 0.5
        %v599 = vmul.f32 %v597, 0.5
        %600 = vst [vmem:[%s323] sm:$0xff] %v598
        %601 = vst [vmem:[%s323 + $0x8] sm:$0xff] %v599
        %602 = vst [vmem:[%s330] sm:$0xff] %v591
        %603 = vst [vmem:[%s330 + $0x8] sm:$0xff] %v594
        %s604 = scalar_lea.vmem %s336, 16
        %v605 = vld [vmem:[%s604] sm:$0xff]
        %v606 = vld [vmem:[%s604 + $0x8] sm:$0xff]
        %607 = vrot.lane.b32.xlu0 %v605, 1
        %v608 = vpop.permute.xlu0 %607
        %609 = vrot.lane.b32.xlu0 %v606, 1
        %v610 = vpop.permute.xlu0 %609
        %v611 = vsel %vm352, %v608, 0.0
        %v612 = vsel %vm352, %v610, 0.0
        %613 = vrot.lane.b32.xlu0 %v605, 127
        %v614 = vpop.permute.xlu0 %613
        %615 = vrot.lane.b32.xlu0 %v606, 127
        %v616 = vpop.permute.xlu0 %615
        %v617 = vsel %vm356, %v614, 0.0
        %v618 = vsel %vm356, %v616, 0.0
        %s619 = scalar_lea.vmem %s343, 16
        %v620 = vld [vmem:[%s619] sm:$0xff]
        %v621 = vld [vmem:[%s619 + $0x8] sm:$0x1]
        %v623 = vsel %vm403, %v621, 0
        %625 = vmatpush.msra.mxu0 0.0
        %626 = vmatpush.msra.mxu0 0.0
        %627 = vmatpush.msra.mxu0 0.0
        %628 = vmatpush.msra.mxu0 0.0
        %629 = vmatpush.msra.mxu0 0.0
        %630 = vmatpush.msra.mxu0 0.0
        %631 = vmatpush.msra.mxu0 0.0
        %632 = vmatpush.msra.mxu0 0.0
        %633 = vmatpush.msra.mxu0 0.0
        %634 = vmatpush.msra.mxu0 0.0
        %635 = vmatpush.msra.mxu0 0.0
        %636 = vmatpush.msra.mxu0 0.0
        %637 = vmatpush.msra.mxu0 0.0
        %638 = vmatpush.msra.mxu0 0.0
        %639 = vmatpush.msra.mxu0 %v623
        %640 = vmatpush.msra.mxu0 %v620
        %641 = vmatmul.f32.gmra.mxu0 %v392
        %v642 = vpop.f32.mrf.mxu0
        %v643 = vadd.f32 0.0, %v642
        %644 = vmatmul.f32.gmra.mxu0 %v395
        %v645 = vpop.f32.mrf.mxu0
        %v646 = vadd.f32 0.0, %v645
        %647 = vmatmul.f32.gmra.mxu0 %v398
        %v648 = vpop.f32.mrf.mxu0
        %v649 = vadd.f32 0.0, %v648
        %650 = vmatmul.f32.gmra.mxu0 %v401
        %v651 = vpop.f32.mrf.mxu0
        %v652 = vadd.f32 0.0, %v651
        %653 = vdwg.mxu0
        %v655 = vsel %vm436, %v643, 0
        %v658 = vsel %vm436, %v646, 0
        %v661 = vsel %vm436, %v649, 0
        %v664 = vsel %vm436, %v652, 0
        %666 = vmatpush.msra.mxu0 0.0
        %667 = vmatpush.msra.mxu0 0.0
        %668 = vmatpush.msra.mxu0 0.0
        %669 = vmatpush.msra.mxu0 0.0
        %670 = vmatpush.msra.mxu0 0.0
        %671 = vmatpush.msra.mxu0 0.0
        %672 = vmatpush.msra.mxu0 0.0
        %673 = vmatpush.msra.mxu0 0.0
        %674 = vmatpush.msra.mxu0 0.0
        %675 = vmatpush.msra.mxu0 0.0
        %676 = vmatpush.msra.mxu0 0.0
        %677 = vmatpush.msra.mxu0 0.0
        %678 = vmatpush.msra.mxu0 0.0
        %679 = vmatpush.msra.mxu0 0.0
        %680 = vmatpush.msra.mxu0 0.0
        %681 = vmatpush.msra.mxu0 %v373
        %682 = vmatmul.f32.gmra.mxu0 %v655
        %v683 = vpop.f32.mrf.mxu0
        %v684 = vadd.f32 0.0, %v683
        %685 = vmatmul.f32.gmra.mxu0 %v658
        %v686 = vpop.f32.mrf.mxu0
        %v687 = vadd.f32 0.0, %v686
        %688 = vmatmul.f32.gmra.mxu0 %v661
        %v689 = vpop.f32.mrf.mxu0
        %v690 = vadd.f32 0.0, %v689
        %691 = vmatmul.f32.gmra.mxu0 %v664
        %v692 = vpop.f32.mrf.mxu0
        %v693 = vadd.f32 0.0, %v692
        %694 = vdwg.mxu0
        %695 = vmatpush.msra.mxu0 0.0
        %696 = vmatpush.msra.mxu0 0.0
        %697 = vmatpush.msra.mxu0 0.0
        %698 = vmatpush.msra.mxu0 0.0
        %699 = vmatpush.msra.mxu0 0.0
        %700 = vmatpush.msra.mxu0 0.0
        %701 = vmatpush.msra.mxu0 0.0
        %702 = vmatpush.msra.mxu0 0.0
        %703 = vmatpush.msra.mxu0 0.0
        %704 = vmatpush.msra.mxu0 0.0
        %705 = vmatpush.msra.mxu0 %v618
        %706 = vmatpush.msra.mxu0 %v617
        %707 = vmatpush.msra.mxu0 %v606
        %708 = vmatpush.msra.mxu0 %v605
        %709 = vmatpush.msra.mxu0 %v612
        %710 = vmatpush.msra.mxu0 %v611
        %711 = vmatmul.f32.gmra.mxu0 %v480
        %v712 = vpop.f32.mrf.mxu0
        %v713 = vadd.f32 %v684, %v712
        %714 = vmatmul.f32.gmra.mxu0 %v483
        %v715 = vpop.f32.mrf.mxu0
        %v716 = vadd.f32 %v687, %v715
        %717 = vmatmul.f32.gmra.mxu0 %v486
        %v718 = vpop.f32.mrf.mxu0
        %v719 = vadd.f32 %v690, %v718
        %720 = vmatmul.f32.gmra.mxu0 %v489
        %v721 = vpop.f32.mrf.mxu0
        %v722 = vadd.f32 %v693, %v721
        %723 = vdwg.mxu0
        %v724 = vtanh.pop %v713
        %v725 = vtanh.pop %v716
        %v726 = vsub.f32 0.0, %v719
        %v727 = vsub.f32 0.0, %v722
        %v728 = vmul.f32 %v726, 1.442695
        %v729 = vpow.pop %v728
        %v730 = vmul.f32 %v727, 1.442695
        %v731 = vpow.pop %v730
        %v732 = vadd.f32 %v729, 1.0
        %v733 = vadd.f32 %v731, 1.0
        %v734 = vrcp.pop %v732
        %v735 = vrcp.pop %v733
        %v736 = vmul.f32 %v724, %v734
        %v737 = vmul.f32 %v725, %v735
        %738 = vmatpush.msra.mxu0 0.0
        %739 = vmatpush.msra.mxu0 0.0
        %740 = vmatpush.msra.mxu0 0.0
        %741 = vmatpush.msra.mxu0 0.0
        %742 = vmatpush.msra.mxu0 0.0
        %743 = vmatpush.msra.mxu0 0.0
        %744 = vmatpush.msra.mxu0 0.0
        %745 = vmatpush.msra.mxu0 0.0
        %746 = vmatpush.msra.mxu0 0.0
        %747 = vmatpush.msra.mxu0 0.0
        %748 = vmatpush.msra.mxu0 0.0
        %749 = vmatpush.msra.mxu0 0.0
        %750 = vmatpush.msra.mxu0 0.0
        %751 = vmatpush.msra.mxu0 0.0
        %752 = vmatpush.msra.mxu0 %v737
        %753 = vmatpush.msra.mxu0 %v736
        %754 = vmatmul.f32.gmra.mxu0 %v556
        %v755 = vpop.f32.mrf.mxu0
        %v756 = vadd.f32 %v537, %v755
        %757 = vmatmul.f32.gmra.mxu0 %v559
        %v758 = vpop.f32.mrf.mxu0
        %v759 = vadd.f32 %v542, %v758
        %760 = vmatmul.f32.gmra.mxu0 %v562
        %v761 = vpop.f32.mrf.mxu0
        %v762 = vadd.f32 %v547, %v761
        %763 = vmatmul.f32.gmra.mxu0 %v565
        %v764 = vpop.f32.mrf.mxu0
        %v765 = vadd.f32 %v552, %v764
        %766 = vdwg.mxu0
        %v767 = vadd.f32 %v756, %v605
        %v768 = vadd.f32 %v759, %v606
        %v769 = vmul.f32 %v767, 0.5
        %v770 = vmul.f32 %v768, 0.5
        %s771 = scalar_lea.vmem %s323, 16 [#allocation2]
        %772 = vst [vmem:[%s771] sm:$0xff] %v769
        %773 = vst [vmem:[%s771 + $0x8] sm:$0xff] %v770
        %s774 = scalar_lea.vmem %s330, 16 [#allocation4]
        %775 = vst [vmem:[%s774] sm:$0xff] %v762
        %776 = vst [vmem:[%s774 + $0x8] sm:$0xff] %v765
        %s777 = sand.u32 %s191, 1
        %s778 = scalar_lea.sflag [#allocation3], %s777
        %s779 = sand.u32 %s191, 1
        %s780 = smul.addr %s779, 32
        %s781 = scalar_lea.vmem [#allocation2], %s780
        %s782 = sand.u32 %s217, 1
        %s783 = scalar_lea.sflag [#allocation5], %s782
        %s784 = sand.u32 %s217, 1
        %s785 = smul.addr %s784, 32
        %s786 = scalar_lea.vmem [#allocation4], %s785
        // Predicated region
        $region49: #{tpu_custom_call.1} parent=47 // pred_check
          %p787 = pneg %p201
        $region50: #{tpu_custom_call.1} parent=47 // pred_check_branch
          %789 = sbr.rel (%p787) target = $region52
        $region51: #{tpu_custom_call.1} parent=47 // pred_region
          %s790 = smul.u32 2, %s26
          %792 = vsyncadd %s778, 0
          %s793 = smul.addr %s790, 2
          %s794 = smul.addr %s793, 8
          %s795 = scalar_lea.hbm %s7, %s794
          %s796 = sshll.u32 %s781, 4
          %s797 = int_to_ptr.vmem [resolvable:$true] %s796
          %s798 = sshll.u32 %s795, 4
          %s799 = int_to_ptr.hbm [resolvable:$true] %s798
          %804 = dma.vmem_to_hbm [thread:$0]  %s797, 512, %s799, %s778, 128, 128, 8
        $region52: #{tpu_custom_call.1} parent=47 // pred_fallthru
          _
        // Predicated region
        $region53: #{tpu_custom_call.1} parent=47 // pred_check
          %p805 = pneg %p227
        $region54: #{tpu_custom_call.1} parent=47 // pred_check_branch
          %807 = sbr.rel (%p805) target = $region56
        $region55: #{tpu_custom_call.1} parent=47 // pred_region
          %s808 = smul.u32 2, %s26
          %810 = vsyncadd %s783, 0
          %s811 = smul.addr %s808, 2
          %s812 = smul.addr %s811, 8
          %s813 = scalar_lea.hbm %s8, %s812
          %s814 = sshll.u32 %s786, 4
          %s815 = int_to_ptr.vmem [resolvable:$true] %s814
          %s816 = sshll.u32 %s813, 4
          %s817 = int_to_ptr.hbm [resolvable:$true] %s816
          %822 = dma.vmem_to_hbm [thread:$0]  %s815, 512, %s817, %s783, 128, 128, 8
        $region56: #{tpu_custom_call.1} parent=47 // pred_fallthru
          _
      $region48: #{tpu_custom_call.1} parent=5 // pred_fallthru
        _
      %p823 = scmp.le.s32.totalorder 2, %s21
      // Predicated region
      $region57: #{tpu_custom_call.1} parent=5 // pred_check
        %p824 = pneg %p823
      $region58: #{tpu_custom_call.1} parent=5 // pred_check_branch
        %826 = sbr.rel (%p824) target = $region60
      $region59: #{tpu_custom_call.1} parent=5 // pred_region
        %s827 = ssub.s32 %s21, 2
        // Predicated region
        $region61: #{tpu_custom_call.1} parent=59 // pred_check
          %p828 = pneg %p207
        $region62: #{tpu_custom_call.1} parent=59 // pred_check_branch
          %830 = sbr.rel (%p828) target = $region64
        $region63: #{tpu_custom_call.1} parent=59 // pred_region
          %s831 = sand.u32 %s192, 1
          %s832 = scalar_lea.sflag [#allocation3], %s831
          %s833 = sand.u32 %s192, 1
          %s834 = smul.addr %s833, 32
          %s835 = scalar_lea.vmem [#allocation2], %s834
          %837 = dma.done %s832, 512
        $region64: #{tpu_custom_call.1} parent=59 // pred_fallthru
          _
        // Predicated region
        $region65: #{tpu_custom_call.1} parent=59 // pred_check
          %p838 = pneg %p233
        $region66: #{tpu_custom_call.1} parent=59 // pred_check_branch
          %840 = sbr.rel (%p838) target = $region68
        $region67: #{tpu_custom_call.1} parent=59 // pred_region
          %s841 = sand.u32 %s218, 1
          %s842 = scalar_lea.sflag [#allocation5], %s841
          %s843 = sand.u32 %s218, 1
          %s844 = smul.addr %s843, 32
          %s845 = scalar_lea.vmem [#allocation4], %s844
          %847 = dma.done %s842, 512
        $region68: #{tpu_custom_call.1} parent=59 // pred_fallthru
          _
      $region60: #{tpu_custom_call.1} parent=5 // pred_fallthru
        _
    $region6: #{tpu_custom_call.1} parent=1 // loop_footer
      %s25 = sadd.s32 1, %s21
    $region7: #{tpu_custom_call.1} parent=1 // loop_footer_branch
      %20 = sbr.rel target = $region3
    $region8: #{tpu_custom_call.1} parent=1 // loop_exit
      _
    %848 = vsyncpa [#allocation3], 1
    %s849 = scalar_lea.sflag [#allocation3], 1
    %850 = vsyncpa %s849, 1
    %851 = vsyncpa [#allocation5], 1
    %s852 = scalar_lea.sflag [#allocation5], 1
    %853 = vsyncpa %s852, 1

</llo_original>
